<compile_context>
chip_gen: v6e
topology: v6e:2x2x1
jax: 0.10.0
libtpu: 0.0.40
codegen_flags: <defaults>
</compile_context>

<pallas_src>
import math

import jax
import jax.numpy as jnp
from jax.experimental import pallas as pl
from jax.experimental.pallas import tpu as pltpu


_TILE_M = 2048            # max lane tile for the fused conv matmul (multiple of 128)
_EW_TILE_BYTES = 2 << 20  # ~2 MiB blocks for the standalone elementwise fallback


def _round_up(x, m):
    return ((x + m - 1) // m) * m


def _pick_tile_m(m_pad128):
    """m_pad128 is a multiple of 128.  Return a lane tile (multiple of 128)."""
    if m_pad128 <= 256:
        return m_pad128
    # Split into at least two tiles so both v7x TensorCores get work
    # ("parallel" grid axis), capped at _TILE_M.
    half = _round_up((m_pad128 + 1) // 2, 128)
    return min(_TILE_M, half)


# ----------------------------------------------------------------------------
# Pallas kernels
# ----------------------------------------------------------------------------
def _make_conv_fused_kernel(activation):
    """matmul (Cout_pad, K) @ (K, tile_M) + bias + optional activation epilogue."""

    def kernel(w_ref, p_ref, b_ref, o_ref):
        acc = jnp.dot(w_ref[...], p_ref[...],
                      preferred_element_type=jnp.float32)      # (Cout_pad, tile_M)
        acc = acc + b_ref[...]                                  # (Cout_pad, 1) lane-bcast
        if activation == "relu":
            acc = jnp.maximum(acc, 0.0)
        elif activation == "sigmoid":
            # Single EUP push per element, exactly bounded in [0, 1].
            acc = 0.5 * (jnp.tanh(0.5 * acc) + 1.0)
        o_ref[...] = acc.astype(o_ref.dtype)

    return kernel


def _relu_kernel(x_ref, o_ref):
    o_ref[...] = jnp.maximum(x_ref[...], 0.0)


def _sigmoid_kernel(x_ref, o_ref):
    x = x_ref[...].astype(jnp.float32)
    y = 0.5 * (jnp.tanh(0.5 * x) + 1.0)
    o_ref[...] = y.astype(o_ref.dtype)


# ----------------------------------------------------------------------------
# Pallas wrappers
# ----------------------------------------------------------------------------
def conv_matmul_fused(w2d, patches, bias2d, activation, out_dtype):
    """(Cout_pad, K) @ (K, M) + bias (+ activation), M tiled on the lane axis.

    w2d:     (Cout_pad, K)  bf16   (Cout padded to a multiple of 16)
    patches: (K, M)         bf16   (M = N*OH*OW, lane-dense)
    bias2d:  (Cout_pad, 1)  f32

    Returns (Cout_pad, M_pad) in `out_dtype`; caller slices the valid region.
    """
    c_out_pad, k_dim = w2d.shape
    _, m_dim = patches.shape

    tile_m = _pick_tile_m(_round_up(m_dim, 128))
    m_pad = _round_up(m_dim, tile_m)          # full tiles -> unmasked, lane-dense stores
    if m_pad != m_dim:
        patches = jnp.pad(patches, ((0, 0), (0, m_pad - m_dim)))
    grid_m = m_pad // tile_m

    return pl.pallas_call(
        _make_conv_fused_kernel(activation),
        out_shape=jax.ShapeDtypeStruct((c_out_pad, m_pad), out_dtype),
        grid=(grid_m,),
        in_specs=[
            pl.BlockSpec((c_out_pad, k_dim), lambda i: (0, 0)),   # weights (resident)
            pl.BlockSpec((k_dim, tile_m), lambda i: (0, i)),      # patches, M-tiled
            pl.BlockSpec((c_out_pad, 1), lambda i: (0, 0)),       # bias
        ],
        out_specs=pl.BlockSpec((c_out_pad, tile_m), lambda i: (0, i)),
        compiler_params=pltpu.CompilerParams(
            dimension_semantics=("parallel",),
            vmem_limit_bytes=48 * 1024 * 1024,   # safe on v7x (64 MiB physical)
        ),
    )(w2d, patches, bias2d)


def _elementwise(x, kernel):
    """Standalone elementwise fallback (wide lane-dense slabs).

    Only used when an activation is NOT fused into a preceding Conv2d.
    """
    orig_shape = x.shape
    total = x.size

    # Widest lane slab that reshapes cleanly (avoids a flatten+pad HBM round trip).
    lane = None
    for cand in (1024, 512, 256, 128):
        if total % cand == 0:
            lane = cand
            break
    if lane is None:
        lane = 128
        pad = (-total) % lane
        flat = jnp.pad(x.reshape(-1), (0, pad))
    else:
        pad = 0
        flat = x.reshape(-1)

    rows = flat.shape[0] // lane
    x2 = flat.reshape(rows, lane)

    bytes_per_row = lane * x2.dtype.itemsize
    budget_rows = max(8, (_EW_TILE_BYTES // bytes_per_row) // 8 * 8)
    tile_rows = rows if rows <= budget_rows else budget_rows   # full-extent or mult of 8
    grid_r = pl.cdiv(rows, tile_rows)

    y = pl.pallas_call(
        kernel,
        out_shape=jax.ShapeDtypeStruct((rows, lane), x2.dtype),
        grid=(grid_r,),
        in_specs=[pl.BlockSpec((tile_rows, lane), lambda i: (i, 0))],
        out_specs=pl.BlockSpec((tile_rows, lane), lambda i: (i, 0)),
        compiler_params=pltpu.CompilerParams(
            dimension_semantics=("parallel",)),
    )(x2)

    y = y.reshape(-1)
    if pad:
        y = y[:total]
    return y.reshape(orig_shape)


# ----------------------------------------------------------------------------
# im2col in channel-major (C, N, H, W) layout.
# Produces (Cin*kh*kw, N*OH*OW) directly -> matches torch.unfold's
# (Cin, kh, kw) ordering of the K axis, no patch transposes.
# The activation is cast to bf16 BEFORE the kh*kw inflation.
# ----------------------------------------------------------------------------
def _im2col_cnhw(x_cnhw, k, stride, padding):
    c, n, h, w = x_cnhw.shape
    xb = x_cnhw.astype(jnp.bfloat16)
    xp = jnp.pad(xb, ((0, 0), (0, 0), (padding, padding), (padding, padding)))
    oh = (h + 2 * padding - k) // stride + 1
    ow = (w + 2 * padding - k) // stride + 1
    taps = []
    for i in range(k):
        for j in range(k):
            taps.append(xp[:, :, i:i + stride * oh:stride, j:j + stride * ow:stride])
    patches = jnp.stack(taps, axis=1)                    # (C, k*k, N, OH, OW)
    patches = patches.reshape(c * k * k, n * oh * ow)    # (K, M)
    return patches, oh, ow


# ----------------------------------------------------------------------------
# Module framework mirroring the PyTorch Miniproject_2 API (forward only)
# ----------------------------------------------------------------------------
class Module(object):
    def forward(self, *input):
        pass

    def backward(self, *gradwrtoutput):
        pass

    def param(self):
        return []


class Conv2d(Module):
    def __init__(self, in_channels, out_channels, kernel_size, stride=1,
                 padding=0, key=None):
        self.in_channels = in_channels
        self.out_channels = out_channels
        self.k = kernel_size
        self.stride = stride
        self.padding = padding
        fan_in = in_channels * kernel_size * kernel_size
        bound = 1.0 / math.sqrt(fan_in)
        if key is None:
            key = jax.random.PRNGKey(0)
        kw, kb = jax.random.split(key)
        # Deterministic PyTorch-style uniform init (f32 master params).
        self.weight = jax.random.uniform(
            kw, (out_channels, in_channels, kernel_size, kernel_size),
            jnp.float32, -bound, bound)
        self.bias = jax.random.uniform(kb, (out_channels,), jnp.float32,
                                       -bound, bound)
        # Precomputed matmul-layout copies (forward-only; bf16 MXU inputs),
        # with Cout padded to a multiple of 16 for dense sublane stores.
        cout_pad = _round_up(out_channels, 16)
        self._cout_pad = cout_pad
        w2d = self.weight.reshape(out_channels, -1).astype(jnp.bfloat16)
        self._w2d = jnp.pad(w2d, ((0, cout_pad - out_channels), (0, 0)))
        b2d = self.bias.reshape(-1, 1)
        self._b2d = jnp.pad(b2d, ((0, cout_pad - out_channels), (0, 0)))

    def _forward_cnhw(self, x_cnhw, activation=None, out_dtype=jnp.float32):
        _, n, _, _ = x_cnhw.shape
        patches, oh, ow = _im2col_cnhw(x_cnhw, self.k, self.stride, self.padding)
        m = n * oh * ow
        out = conv_matmul_fused(self._w2d, patches, self._b2d, activation, out_dtype)
        out = out[:self.out_channels, :m]                   # drop Cout / M padding
        return out.reshape(self.out_channels, n, oh, ow)    # already CNHW

    def forward(self, *input):
        # Public NCHW interface (standalone use) -> f32 output.
        x = jnp.transpose(input[0], (1, 0, 2, 3))            # NCHW -> CNHW
        y = self._forward_cnhw(x, activation=None, out_dtype=jnp.float32)
        return jnp.transpose(y, (1, 0, 2, 3))                # CNHW -> NCHW

    def param(self):
        return [self.weight, self.bias]


class ReLU(Module):
    def forward(self, *input):
        return _elementwise(input[0], _relu_kernel)


class Sigmoid(Module):
    def forward(self, *input):
        return _elementwise(input[0], _sigmoid_kernel)


class Sequential(Module):
    """Class implementing our model with sequential layers."""

    def __init__(self, *layers):
        self.layers = list(layers)
        self.backward_output = None

    def forward(self, *input):
        in_dtype = input[0].dtype
        x = jnp.transpose(input[0], (1, 0, 2, 3))    # NCHW -> internal CNHW
        i = 0
        n_layers = len(self.layers)
        while i < n_layers:
            layer = self.layers[i]
            if isinstance(layer, Conv2d):
                act = None
                if i + 1 < n_layers and isinstance(self.layers[i + 1], ReLU):
                    act, i = "relu", i + 1
                elif i + 1 < n_layers and isinstance(self.layers[i + 1], Sigmoid):
                    act, i = "sigmoid", i + 1
                is_last = (i == n_layers - 1)
                # Intermediate conv outputs stay bf16 (next im2col casts to bf16
                # anyway); only the final output is written in f32.
                out_dtype = jnp.float32 if is_last else jnp.bfloat16
                x = layer._forward_cnhw(x, activation=act, out_dtype=out_dtype)
            elif isinstance(layer, ReLU):
                x = _elementwise(x, _relu_kernel)             # layout-agnostic
            elif isinstance(layer, Sigmoid):
                x = _elementwise(x, _sigmoid_kernel)
            else:
                # Unknown layer type: present it with the standard NCHW layout.
                x = jnp.transpose(x, (1, 0, 2, 3))
                x = layer.forward(x)
                x = jnp.transpose(x, (1, 0, 2, 3))
            i += 1
        if x.dtype != in_dtype:
            x = x.astype(in_dtype)
        return jnp.transpose(x, (1, 0, 2, 3))        # internal CNHW -> NCHW

    def backward(self, *gradwrtoutput):
        # TODO(synk): backward pass not implemented (forward-only Pallas kernels).
        x = gradwrtoutput[0]
        for layer in reversed(self.layers):
            x = layer.backward(x)
        return x

    def param(self):
        parameters = []
        for layer in self.layers:
            for p in layer.param():
                parameters.append(p)
        return parameters

    def append_layer(self, layer):
        self.layers.append(layer)


# ----------------------------------------------------------------------------
# Plain-JAX reference (for correctness checking only)
# ----------------------------------------------------------------------------
def _ref_conv(x, w, b, stride, padding):
    y = jax.lax.conv_general_dilated(
        x, w, window_strides=(stride, stride),
        padding=[(padding, padding), (padding, padding)],
        dimension_numbers=("NCHW", "OIHW", "NCHW"),
        precision=jax.lax.Precision.HIGHEST)
    return y + b.reshape(1, -1, 1, 1)


# ----------------------------------------------------------------------------
if __name__ == "__main__":
    key = jax.random.PRNGKey(0)
    k1, k2, kx = jax.random.split(key, 3)

    # Representative Miniproject_2-style stack: conv / relu / conv / sigmoid.
    conv1 = Conv2d(4, 8, 3, stride=2, padding=1, key=k1)
    conv2 = Conv2d(8, 4, 3, stride=2, padding=1, key=k2)
    model = Sequential(conv1, ReLU(), conv2, Sigmoid())

    x = jax.random.normal(kx, (2, 4, 16, 16), jnp.float32)  # NCHW

    y = jax.jit(model.forward)(x)
    jax.block_until_ready(y)

    assert y.shape == (2, 4, 4, 4), y.shape
    assert y.dtype == jnp.float32, y.dtype
    assert bool(jnp.all((y >= 0.0) & (y <= 1.0)))            # sigmoid range (tanh form)

    # Numerical check vs plain-JAX reference (bf16 MXU inputs & intermediates).
    y_ref = jax.nn.sigmoid(
        _ref_conv(jnp.maximum(_ref_conv(x, conv1.weight, conv1.bias, 2, 1), 0.0),
                  conv2.weight, conv2.bias, 2, 1))
    max_err = float(jnp.max(jnp.abs(y - y_ref)))
    assert max_err < 7e-2, max_err

    # Exercise the standalone (non-fused) elementwise path as well.
    z = ReLU().forward(x)
    jax.block_until_ready(z)
    assert z.shape == x.shape
    assert bool(jnp.array_equal(z, jnp.maximum(x, 0.0)))

    # Standalone Conv2d public NCHW path.
    y1 = jax.jit(conv1.forward)(x)
    jax.block_until_ready(y1)
    assert y1.shape == (2, 8, 8, 8), y1.shape
    y1_ref = _ref_conv(x, conv1.weight, conv1.bias, 2, 1)
    assert float(jnp.max(jnp.abs(y1 - y1_ref))) < 7e-2

    print("KERNEL_OK")
</pallas_src>

<mosaic_0001>
module attributes {stable_mosaic.version = 11 : i64} {
  func.func @kernel(%arg0: i32, %arg1: memref<16x36xbf16, #tpu.memory_space<vmem>>, %arg2: memref<36x128xbf16, #tpu.memory_space<vmem>>, %arg3: memref<16x1xf32, #tpu.memory_space<vmem>>, %arg4: memref<16x128xbf16, #tpu.memory_space<vmem>>) attributes {dimension_semantics = [#tpu.dimension_semantics<parallel>], iteration_bounds = array<i64: 1>, scalar_prefetch = 0 : i64, scratch_operands = 0 : i64, tpu.core_type = #tpu.core_type<tc>, window_params = [{pipeline_mode = #tpu.pipeline_mode<synchronous>, transform_indices = @transform_0, window_bounds = array<i64: 16, 36>}, {transform_indices = @transform_1, window_bounds = array<i64: 36, 128>}, {pipeline_mode = #tpu.pipeline_mode<synchronous>, transform_indices = @transform_2, window_bounds = array<i64: 16, 1>}, {transform_indices = @transform_3, window_bounds = array<i64: 16, 128>}]} {
    %c0 = arith.constant 0 : index
    %c0_0 = arith.constant 0 : index
    %0 = vector.load %arg1[%c0, %c0_0] : memref<16x36xbf16, #tpu.memory_space<vmem>>, vector<16x36xbf16>
    %c0_1 = arith.constant 0 : index
    %c0_2 = arith.constant 0 : index
    %1 = vector.load %arg2[%c0_1, %c0_2] : memref<36x128xbf16, #tpu.memory_space<vmem>>, vector<36x128xbf16>
    %cst = arith.constant dense<0.000000e+00> : vector<16x128xf32>
    %2 = tpu.matmul %0, %1, %cst {dimension_numbers = #tpu.dot_dimension_numbers<[1], [0], [0], [1], [0, 0, 1, 1], [], []>} : vector<16x36xbf16>, vector<36x128xbf16>, vector<16x128xf32> -> vector<16x128xf32>
    %c0_3 = arith.constant 0 : index
    %c0_4 = arith.constant 0 : index
    %3 = vector.load %arg3[%c0_3, %c0_4] : memref<16x1xf32, #tpu.memory_space<vmem>>, vector<16x1xf32>
    %4 = vector.broadcast %3 : vector<16x1xf32> to vector<16x128xf32>
    %5 = arith.addf %2, %4 : vector<16x128xf32>
    %cst_5 = arith.constant 0.000000e+00 : f32
    %6 = vector.broadcast %cst_5 : f32 to vector<16x128xf32>
    %7 = arith.maximumf %5, %6 : vector<16x128xf32>
    %8 = arith.truncf %7 : vector<16x128xf32> to vector<16x128xbf16>
    %c0_6 = arith.constant 0 : index
    %c0_7 = arith.constant 0 : index
    %9 = vector.load %arg4[%c0_6, %c0_7] : memref<16x128xbf16, #tpu.memory_space<vmem>>, vector<16x128xbf16>
    tpu.vector_store %arg4[%c0_6, %c0_7], %8 {strides = array<i32>} : memref<16x128xbf16, #tpu.memory_space<vmem>>, vector<16x128xbf16>,
    return
  }
  func.func @transform_0(%arg0: i32) -> (i32, i32) {
    %c0_i32 = arith.constant 0 : i32
    %c0_i32_0 = arith.constant 0 : i32
    %c0_i32_1 = arith.constant 0 : i32
    return %c0_i32, %c0_i32_0 : i32, i32
  }
  func.func @transform_1(%arg0: i32) -> (i32, i32) {
    %c0_i32 = arith.constant 0 : i32
    %c0_i32_0 = arith.constant 0 : i32
    return %c0_i32, %arg0 : i32, i32
  }
  func.func @transform_2(%arg0: i32) -> (i32, i32) {
    %c0_i32 = arith.constant 0 : i32
    %c0_i32_0 = arith.constant 0 : i32
    %c0_i32_1 = arith.constant 0 : i32
    return %c0_i32, %c0_i32_0 : i32, i32
  }
  func.func @transform_3(%arg0: i32) -> (i32, i32) {
    %c0_i32 = arith.constant 0 : i32
    %c0_i32_0 = arith.constant 0 : i32
    return %c0_i32, %arg0 : i32, i32
  }
}

module attributes {stable_mosaic.version = 11 : i64} {
  func.func @kernel(%arg0: i32, %arg1: memref<16x72xbf16, #tpu.memory_space<vmem>>, %arg2: memref<72x128xbf16, #tpu.memory_space<vmem>>, %arg3: memref<16x1xf32, #tpu.memory_space<vmem>>, %arg4: memref<16x128xf32, #tpu.memory_space<vmem>>) attributes {dimension_semantics = [#tpu.dimension_semantics<parallel>], iteration_bounds = array<i64: 1>, scalar_prefetch = 0 : i64, scratch_operands = 0 : i64, tpu.core_type = #tpu.core_type<tc>, window_params = [{pipeline_mode = #tpu.pipeline_mode<synchronous>, transform_indices = @transform_0, window_bounds = array<i64: 16, 72>}, {transform_indices = @transform_1, window_bounds = array<i64: 72, 128>}, {pipeline_mode = #tpu.pipeline_mode<synchronous>, transform_indices = @transform_2, window_bounds = array<i64: 16, 1>}, {transform_indices = @transform_3, window_bounds = array<i64: 16, 128>}]} {
    %c0 = arith.constant 0 : index
    %c0_0 = arith.constant 0 : index
    %0 = vector.load %arg1[%c0, %c0_0] : memref<16x72xbf16, #tpu.memory_space<vmem>>, vector<16x72xbf16>
    %c0_1 = arith.constant 0 : index
    %c0_2 = arith.constant 0 : index
    %1 = vector.load %arg2[%c0_1, %c0_2] : memref<72x128xbf16, #tpu.memory_space<vmem>>, vector<72x128xbf16>
    %cst = arith.constant dense<0.000000e+00> : vector<16x128xf32>
    %2 = tpu.matmul %0, %1, %cst {dimension_numbers = #tpu.dot_dimension_numbers<[1], [0], [0], [1], [0, 0, 1, 1], [], []>} : vector<16x72xbf16>, vector<72x128xbf16>, vector<16x128xf32> -> vector<16x128xf32>
    %c0_3 = arith.constant 0 : index
    %c0_4 = arith.constant 0 : index
    %3 = vector.load %arg3[%c0_3, %c0_4] : memref<16x1xf32, #tpu.memory_space<vmem>>, vector<16x1xf32>
    %4 = vector.broadcast %3 : vector<16x1xf32> to vector<16x128xf32>
    %5 = arith.addf %2, %4 : vector<16x128xf32>
    %cst_5 = arith.constant 5.000000e-01 : f32
    %6 = vector.broadcast %cst_5 : f32 to vector<16x128xf32>
    %7 = arith.mulf %6, %5 : vector<16x128xf32>
    %8 = math.tanh %7 : vector<16x128xf32>
    %cst_6 = arith.constant 1.000000e+00 : f32
    %9 = vector.broadcast %cst_6 : f32 to vector<16x128xf32>
    %10 = arith.addf %8, %9 : vector<16x128xf32>
    %cst_7 = arith.constant 5.000000e-01 : f32
    %11 = vector.broadcast %cst_7 : f32 to vector<16x128xf32>
    %12 = arith.mulf %11, %10 : vector<16x128xf32>
    %c0_8 = arith.constant 0 : index
    %c0_9 = arith.constant 0 : index
    %13 = vector.load %arg4[%c0_8, %c0_9] : memref<16x128xf32, #tpu.memory_space<vmem>>, vector<16x128xf32>
    tpu.vector_store %arg4[%c0_8, %c0_9], %12 {strides = array<i32>} : memref<16x128xf32, #tpu.memory_space<vmem>>, vector<16x128xf32>,
    return
  }
  func.func @transform_0(%arg0: i32) -> (i32, i32) {
    %c0_i32 = arith.constant 0 : i32
    %c0_i32_0 = arith.constant 0 : i32
    %c0_i32_1 = arith.constant 0 : i32
    return %c0_i32, %c0_i32_0 : i32, i32
  }
  func.func @transform_1(%arg0: i32) -> (i32, i32) {
    %c0_i32 = arith.constant 0 : i32
    %c0_i32_0 = arith.constant 0 : i32
    return %c0_i32, %arg0 : i32, i32
  }
  func.func @transform_2(%arg0: i32) -> (i32, i32) {
    %c0_i32 = arith.constant 0 : i32
    %c0_i32_0 = arith.constant 0 : i32
    %c0_i32_1 = arith.constant 0 : i32
    return %c0_i32, %c0_i32_0 : i32, i32
  }
  func.func @transform_3(%arg0: i32) -> (i32, i32) {
    %c0_i32 = arith.constant 0 : i32
    %c0_i32_0 = arith.constant 0 : i32
    return %c0_i32, %arg0 : i32, i32
  }
}

</mosaic_0001>

<llo_original>
// kernel: forward.2
$region0: #{forward.2}
  #allocation0 [shape = 'u32[]', space=smem, size = 0x4, offset = 0x4, fixed_abs, tag = 'smem constant byte address 0x4 - core index']
  #allocation1 [shape = 'u32[144,128]{1,0:T(1,128)}', space=vmem, size = 0x12000, scoped, tag = 'internal scratch']
  %s0 = inlined_call_operand.vmem [shape: bf16[16,36], index: 0, kind: input, shape index: {}]
  %s1 = inlined_call_operand.vmem [shape: bf16[36,128], index: 1, kind: input, shape index: {}]
  %s2 = inlined_call_operand.vmem [shape: f32[16,1], index: 2, kind: input, shape index: {}]
  %s3 = inlined_call_operand.vmem [shape: bf16[16,128], index: 3, kind: output, shape index: {}]
  %s4 = sld [smem:[#allocation0]]
  $region22: #{forward.2} parent=0
    _
  %s6 = ssub.s32 1, %s4
  %s7 = scalar_select 0, %s6, %s4
  // Predicated region
  $region2: #{forward.2} parent=0 // pred_check
    _
  $region3: #{forward.2} parent=0 // pred_check_branch
    %9 = sbr.rel (0) target = $region5
  $region4: #{forward.2} parent=0 // pred_region
    _
  $region5: #{forward.2} parent=0 // pred_fallthru
    _
  // Predicated region
  $region6: #{forward.2} parent=0 // pred_check
    _
  $region7: #{forward.2} parent=0 // pred_check_branch
    %11 = sbr.rel (0) target = $region9
  $region8: #{forward.2} parent=0 // pred_region
    _
  $region9: #{forward.2} parent=0 // pred_fallthru
    _
  // Predicated region
  $region10: #{forward.2} parent=0 // pred_check
    _
  $region11: #{forward.2} parent=0 // pred_check_branch
    %13 = sbr.rel (0) target = $region13
  $region12: #{forward.2} parent=0 // pred_region
    _
  $region13: #{forward.2} parent=0 // pred_fallthru
    _
  %v15 = vld [vmem:[%s0] sm:$0xf]
  %v16 = vld [vmem:[%s0 + $0x4] sm:$0xf]
  %v17 = vld [vmem:[%s1] sm:$0xf]
  %v18 = vld [vmem:[%s1 + $0x4] sm:$0xf]
  %v19 = vld [vmem:[%s1 + $0x8] sm:$0xf]
  %v20 = vld [vmem:[%s1 + $0xc] sm:$0xf]
  %v21 = vld [vmem:[%s1 + $0x10] sm:$0x3]
  %v22 = vld [vmem:[%s2] sm:$0xff]
  %v23 = vld [vmem:[%s2 + $0x8] sm:$0xff]
  %25 = vset.pattern.permute.xlu0 0
  %26 = vperm.xlu0 %25, %v22
  %v27 = vpop.permute.xlu0 %26
  %30 = vset.pattern.permute.xlu0 0
  %31 = vperm.xlu0 %30, %v23
  %v32 = vpop.permute.xlu0 %31
  %v36 = vunpack.c.l.b16 %v15
  %v37 = vunpack.c.l.b16 %v16
  %v38 = vpack.c.b16 %v37, %v36
  %v44 = vunpack.c.l.b16 %v17
  %v45 = vunpack.c.l.b16 %v18
  %v46 = vunpack.c.l.b16 %v19
  %v47 = vunpack.c.l.b16 %v20
  %v48 = vunpack.c.l.b16 %v21
  %v49 = vpack.c.b16 %v45, %v44
  %v50 = vpack.c.b16 %v47, %v46
  %v51 = vpack.c.b16 %v48, %v48
  %vm54 = vcmask 293888
  %v56 = vsel %vm54, %v38, 0
  %vm58 = vcmask 1041408
  %v60 = vsel %vm58, %v51, 0
  %62 = vmatprep.subr.bf16.mxu0 0
  %63 = vmatpush1.bf16.msra.mxu0 0
  %64 = vmatprep.subr.bf16.mxu0 0
  %65 = vmatpush1.bf16.msra.mxu0 0
  %66 = vmatprep.subr.bf16.mxu0 0
  %67 = vmatpush1.bf16.msra.mxu0 0
  %68 = vmatprep.subr.bf16.mxu0 0
  %69 = vmatpush1.bf16.msra.mxu0 0
  %70 = vmatprep.subr.bf16.mxu0 0
  %71 = vmatpush1.bf16.msra.mxu0 0
  %72 = vmatprep.subr.bf16.mxu0 0
  %73 = vmatpush1.bf16.msra.mxu0 %v60
  %74 = vmatprep.subr.bf16.mxu0 0
  %75 = vmatpush1.bf16.msra.mxu0 %v50
  %76 = vmatprep.subr.bf16.mxu0 0
  %77 = vmatpush1.bf16.msra.mxu0 %v49
  %78 = vmatprep.subr.bf16.mxu0 0
  %79 = vmatpush2.bf16.msra.mxu0 0
  %80 = vmatprep.subr.bf16.mxu0 0
  %81 = vmatpush2.bf16.msra.mxu0 0
  %82 = vmatprep.subr.bf16.mxu0 0
  %83 = vmatpush2.bf16.msra.mxu0 0
  %84 = vmatprep.subr.bf16.mxu0 0
  %85 = vmatpush2.bf16.msra.mxu0 0
  %86 = vmatprep.subr.bf16.mxu0 0
  %87 = vmatpush2.bf16.msra.mxu0 0
  %88 = vmatprep.subr.bf16.mxu0 0
  %89 = vmatpush2.bf16.msra.mxu0 0
  %90 = vmatprep.subr.bf16.mxu0 0
  %91 = vmatpush2.bf16.msra.mxu0 0
  %92 = vmatprep.subr.bf16.mxu0 0
  %93 = vmatpush2.bf16.msra.mxu0 0
  %94 = vmatprep.mubr.bf16.mxu0 0
  %95 = vmatmul.mubr.bf16.gmra.mxu0 %v56
  %v96 = vpop.f32.mrf.mxu0
  %v97 = vadd.f32 %v27, %v96
  %v98 = vpop.f32.mrf.mxu0
  %v99 = vpop.f32.mrf.mxu0
  %v100 = vadd.f32 %v32, %v99
  %v101 = vpop.f32.mrf.mxu0
  %102 = vdwg.mxu0
  %v103 = vmax.f32 %v97, 0.0
  %v104 = vmax.f32 %v100, 0.0
  %v105 = vpack.c.bf16 %v104, %v103
  %v107 = vunpack.c.l.b16 %v105
  %v108 = vunpack.c.h.b16 %v105
  %v109 = vpack.c.b16 %v107, %v107
  %v110 = vpack.c.b16 %v108, %v108
  %113 = vst [vmem:[%s3] sm:$0xf] %v109
  %114 = vst [vmem:[%s3 + $0x4] sm:$0xf] %v110
  // Predicated region
  $region14: #{forward.2} parent=0 // pred_check
    _
  $region15: #{forward.2} parent=0 // pred_check_branch
    %116 = sbr.rel (0) target = $region17
  $region16: #{forward.2} parent=0 // pred_region
    _
  $region17: #{forward.2} parent=0 // pred_fallthru
    _
  // Predicated region
  $region18: #{forward.2} parent=0 // pred_check
    _
  $region19: #{forward.2} parent=0 // pred_check_branch
    %118 = sbr.rel (0) target = $region21
  $region20: #{forward.2} parent=0 // pred_region
    _
  $region21: #{forward.2} parent=0 // pred_fallthru
    _

// kernel: forward.3
$region0: #{forward.3}
  #allocation0 [shape = 'u32[]', space=smem, size = 0x4, offset = 0x4, fixed_abs, tag = 'smem constant byte address 0x4 - core index']
  #allocation1 [shape = 'u32[144,128]{1,0:T(1,128)}', space=vmem, size = 0x12000, scoped, tag = 'internal scratch']
  %s0 = inlined_call_operand.vmem [shape: bf16[16,72], index: 0, kind: input, shape index: {}]
  %s1 = inlined_call_operand.vmem [shape: bf16[72,128], index: 1, kind: input, shape index: {}]
  %s2 = inlined_call_operand.vmem [shape: f32[16,1], index: 2, kind: input, shape index: {}]
  %s3 = inlined_call_operand.vmem [shape: f32[16,128], index: 3, kind: output, shape index: {}]
  %s4 = sld [smem:[#allocation0]]
  $region22: #{forward.3} parent=0
    _
  %s6 = ssub.s32 1, %s4
  %s7 = scalar_select 0, %s6, %s4
  // Predicated region
  $region2: #{forward.3} parent=0 // pred_check
    _
  $region3: #{forward.3} parent=0 // pred_check_branch
    %9 = sbr.rel (0) target = $region5
  $region4: #{forward.3} parent=0 // pred_region
    _
  $region5: #{forward.3} parent=0 // pred_fallthru
    _
  // Predicated region
  $region6: #{forward.3} parent=0 // pred_check
    _
  $region7: #{forward.3} parent=0 // pred_check_branch
    %11 = sbr.rel (0) target = $region9
  $region8: #{forward.3} parent=0 // pred_region
    _
  $region9: #{forward.3} parent=0 // pred_fallthru
    _
  // Predicated region
  $region10: #{forward.3} parent=0 // pred_check
    _
  $region11: #{forward.3} parent=0 // pred_check_branch
    %13 = sbr.rel (0) target = $region13
  $region12: #{forward.3} parent=0 // pred_region
    _
  $region13: #{forward.3} parent=0 // pred_fallthru
    _
  %v15 = vld [vmem:[%s0] sm:$0xf]
  %v16 = vld [vmem:[%s0 + $0x4] sm:$0xf]
  %v17 = vld [vmem:[%s1] sm:$0xf]
  %v18 = vld [vmem:[%s1 + $0x4] sm:$0xf]
  %v19 = vld [vmem:[%s1 + $0x8] sm:$0xf]
  %v20 = vld [vmem:[%s1 + $0xc] sm:$0xf]
  %v21 = vld [vmem:[%s1 + $0x10] sm:$0xf]
  %v22 = vld [vmem:[%s1 + $0x14] sm:$0xf]
  %v23 = vld [vmem:[%s1 + $0x18] sm:$0xf]
  %v24 = vld [vmem:[%s1 + $0x1c] sm:$0xf]
  %v25 = vld [vmem:[%s1 + $0x20] sm:$0xf]
  %v26 = vld [vmem:[%s2] sm:$0xff]
  %v27 = vld [vmem:[%s2 + $0x8] sm:$0xff]
  %29 = vset.pattern.permute.xlu0 0
  %30 = vperm.xlu0 %29, %v26
  %v31 = vpop.permute.xlu0 %30
  %34 = vset.pattern.permute.xlu0 0
  %35 = vperm.xlu0 %34, %v27
  %v36 = vpop.permute.xlu0 %35
  %v40 = vunpack.c.l.b16 %v15
  %v41 = vunpack.c.l.b16 %v16
  %v42 = vpack.c.b16 %v41, %v40
  %v52 = vunpack.c.l.b16 %v17
  %v53 = vunpack.c.l.b16 %v18
  %v54 = vunpack.c.l.b16 %v19
  %v55 = vunpack.c.l.b16 %v20
  %v56 = vunpack.c.l.b16 %v21
  %v57 = vunpack.c.l.b16 %v22
  %v58 = vunpack.c.l.b16 %v23
  %v59 = vunpack.c.l.b16 %v24
  %v60 = vunpack.c.l.b16 %v25
  %v61 = vpack.c.b16 %v53, %v52
  %v62 = vpack.c.b16 %v55, %v54
  %v63 = vpack.c.b16 %v57, %v56
  %v64 = vpack.c.b16 %v59, %v58
  %v65 = vpack.c.b16 %v60, %v60
  %vm70 = vcmask 588800
  %v72 = vsel %vm70, %v42, 0
  %vm74 = vcmask 1043456
  %v76 = vsel %vm74, %v65, 0
  %78 = vmatprep.subr.bf16.mxu0 0
  %79 = vmatpush1.bf16.msra.mxu0 0
  %80 = vmatprep.subr.bf16.mxu0 0
  %81 = vmatpush1.bf16.msra.mxu0 0
  %82 = vmatprep.subr.bf16.mxu0 0
  %83 = vmatpush1.bf16.msra.mxu0 0
  %84 = vmatprep.subr.bf16.mxu0 0
  %85 = vmatpush1.bf16.msra.mxu0 %v76
  %86 = vmatprep.subr.bf16.mxu0 0
  %87 = vmatpush1.bf16.msra.mxu0 %v64
  %88 = vmatprep.subr.bf16.mxu0 0
  %89 = vmatpush1.bf16.msra.mxu0 %v63
  %90 = vmatprep.subr.bf16.mxu0 0
  %91 = vmatpush1.bf16.msra.mxu0 %v62
  %92 = vmatprep.subr.bf16.mxu0 0
  %93 = vmatpush1.bf16.msra.mxu0 %v61
  %94 = vmatprep.subr.bf16.mxu0 0
  %95 = vmatpush2.bf16.msra.mxu0 0
  %96 = vmatprep.subr.bf16.mxu0 0
  %97 = vmatpush2.bf16.msra.mxu0 0
  %98 = vmatprep.subr.bf16.mxu0 0
  %99 = vmatpush2.bf16.msra.mxu0 0
  %100 = vmatprep.subr.bf16.mxu0 0
  %101 = vmatpush2.bf16.msra.mxu0 0
  %102 = vmatprep.subr.bf16.mxu0 0
  %103 = vmatpush2.bf16.msra.mxu0 0
  %104 = vmatprep.subr.bf16.mxu0 0
  %105 = vmatpush2.bf16.msra.mxu0 0
  %106 = vmatprep.subr.bf16.mxu0 0
  %107 = vmatpush2.bf16.msra.mxu0 0
  %108 = vmatprep.subr.bf16.mxu0 0
  %109 = vmatpush2.bf16.msra.mxu0 0
  %110 = vmatprep.mubr.bf16.mxu0 0
  %111 = vmatmul.mubr.bf16.gmra.mxu0 %v72
  %v112 = vpop.f32.mrf.mxu0
  %v113 = vadd.f32 %v31, %v112
  %v114 = vpop.f32.mrf.mxu0
  %v115 = vpop.f32.mrf.mxu0
  %v116 = vadd.f32 %v36, %v115
  %v117 = vpop.f32.mrf.mxu0
  %118 = vdwg.mxu0
  %v119 = vmul.f32 %v113, 0.5
  %v120 = vmul.f32 %v116, 0.5
  %v121 = vtanh.pop %v119
  %v122 = vtanh.pop %v120
  %v123 = vadd.f32 %v121, 1.0
  %v124 = vadd.f32 %v122, 1.0
  %v125 = vmul.f32 %v123, 0.5
  %v126 = vmul.f32 %v124, 0.5
  %127 = vst [vmem:[%s3] sm:$0xff] %v125
  %128 = vst [vmem:[%s3 + $0x8] sm:$0xff] %v126
  // Predicated region
  $region14: #{forward.3} parent=0 // pred_check
    _
  $region15: #{forward.3} parent=0 // pred_check_branch
    %130 = sbr.rel (0) target = $region17
  $region16: #{forward.3} parent=0 // pred_region
    _
  $region17: #{forward.3} parent=0 // pred_fallthru
    _
  // Predicated region
  $region18: #{forward.3} parent=0 // pred_check
    _
  $region19: #{forward.3} parent=0 // pred_check_branch
    %132 = sbr.rel (0) target = $region21
  $region20: #{forward.3} parent=0 // pred_region
    _
  $region21: #{forward.3} parent=0 // pred_fallthru
    _

</llo_original>
